<compile_context>
chip_gen: v6e
topology: v6e:2x2x1
jax: 0.10.0
libtpu: 0.0.40
codegen_flags: <defaults>
</compile_context>

<pallas_src>
import math
from functools import partial

import numpy as np
import jax
import jax.numpy as jnp
from jax.experimental import pallas as pl
from jax.experimental.pallas import tpu as pltpu


# Fallback flag: if pl.Buffered(1) (single-buffered grid-invariant weights) is
# rejected by the installed Pallas/Mosaic version, fall back to the default
# double buffering once and remember.
_SINGLE_BUFFER_OK = [True]


# ------------------------------- small helpers ------------------------------

def _round_up(n, m):
    return ((n + m - 1) // m) * m


def _pad_rows_to(x, n):
    if x.shape[0] == n:
        return x
    return jnp.pad(x, ((0, n - x.shape[0]), (0, 0)))


def _row_tile(n, target):
    # Pick (row_tile, padded_rows): row_tile is a multiple of 8 dividing
    # padded_rows.  The transformer main path is pre-padded to a multiple of
    # 512 in run_blocks, so these kernels never re-pad there.
    n8 = _round_up(n, 8)
    if n8 <= target:
        return n8, n8
    for t in (target, 512, 256, 128):
        if t <= target and n8 % t == 0:
            return t, n8
    return target, _round_up(n, target)


def _erf(x):
    # Abramowitz & Stegun 7.1.26 (max abs err ~1.5e-7).  The divide is routed
    # to the EUP via the approximate reciprocal (VALU is the busy slot in the
    # [tm, 4C] fp32 GELU epilogue).
    a1, a2, a3, a4, a5 = 0.254829592, -0.284496736, 1.421413741, -1.453152027, 1.061405429
    p = 0.3275911
    ax = jnp.abs(x)
    t = pl.reciprocal(1.0 + p * ax, approx=True)
    poly = t * (a1 + t * (a2 + t * (a3 + t * (a4 + t * a5))))
    y = 1.0 - poly * jnp.exp(-ax * ax)
    return jnp.where(x >= 0, y, -y)


def _gelu_exact(x):
    # PyTorch nn.GELU default is the exact erf form.
    return 0.5 * x * (1.0 + _erf(x * 0.7071067811865476))


# ----------------------------- Pallas kernels ------------------------------

def _linear_kernel(x_ref, wt_ref, b_ref, o_ref, acc_ref, *, nk):
    k = pl.program_id(2)

    @pl.when(k == 0)
    def _init():
        acc_ref[...] = jnp.zeros_like(acc_ref)

    # x arrives in bf16 already (cast once in the wrapper, not per k-step).
    acc_ref[...] += jnp.dot(x_ref[...], wt_ref[...],
                            preferred_element_type=jnp.float32)

    @pl.when(k == nk - 1)
    def _flush():
        o_ref[...] = (acc_ref[...] + b_ref[...]).astype(o_ref.dtype)


def linear(x, wt, b, out_dtype=None):
    # x: [N, Din] (any float dtype), wt: [Din, Dout] bf16 (transposed PyTorch
    # weight), b: [1, Dout] fp32.  Output defaults to fp32.
    N, Din = x.shape
    Dout = wt.shape[1]
    out_dtype = jnp.float32 if out_dtype is None else out_dtype
    xb = x if x.dtype == jnp.bfloat16 else x.astype(jnp.bfloat16)

    tm, Npad = _row_tile(N, 512)
    Mpad = _round_up(Dout, 128)          # lane-dense output stores
    tn = 256 if (Mpad % 256 == 0) else 128
    if Din <= 1024:
        tk = Din
    elif Din % 1024 == 0:
        tk = 1024
    elif Din % 512 == 0:
        tk = 512
    else:
        tk = 1024
    Kpad = _round_up(Din, tk)

    if Npad != N or Kpad != Din:
        xb = jnp.pad(xb, ((0, Npad - N), (0, Kpad - Din)))
    wtp = wt
    if Kpad != Din or Mpad != Dout:
        wtp = jnp.pad(wt, ((0, Kpad - Din), (0, Mpad - Dout)))
    bp = b if Mpad == Dout else jnp.pad(b, ((0, 0), (0, Mpad - Dout)))

    nk = Kpad // tk
    out = pl.pallas_call(
        partial(_linear_kernel, nk=nk),
        out_shape=jax.ShapeDtypeStruct((Npad, Mpad), out_dtype),
        grid=(Npad // tm, Mpad // tn, nk),
        in_specs=[pl.BlockSpec((tm, tk), lambda i, j, k: (i, k)),
                  pl.BlockSpec((tk, tn), lambda i, j, k: (k, j)),
                  pl.BlockSpec((1, tn), lambda i, j, k: (0, j))],
        out_specs=pl.BlockSpec((tm, tn), lambda i, j, k: (i, j)),
        scratch_shapes=[pltpu.VMEM((tm, tn), jnp.float32)],
        compiler_params=pltpu.CompilerParams(
            dimension_semantics=("parallel", "parallel", "arbitrary")),
    )(xb, wtp, bp)
    if Npad != N or Mpad != Dout:
        out = out[:N, :Dout]
    return out


def _rmsnorm_kernel(x_ref, g_ref, o_ref):
    x = x_ref[...].astype(jnp.float32)
    ms = jnp.mean(x * x, axis=-1, keepdims=True)
    o_ref[...] = (x * jax.lax.rsqrt(ms + 1e-6) * g_ref[...]).astype(o_ref.dtype)


def rmsnorm(x, g):
    # x: [N, C], g: [1, C]
    N, C = x.shape
    tm, Npad = _row_tile(N, 1024)
    xp = _pad_rows_to(x, Npad)
    out = pl.pallas_call(
        _rmsnorm_kernel,
        out_shape=jax.ShapeDtypeStruct((Npad, C), x.dtype),
        grid=(Npad // tm,),
        in_specs=[pl.BlockSpec((tm, C), lambda i: (i, 0)),
                  pl.BlockSpec((1, C), lambda i: (0, 0))],
        out_specs=pl.BlockSpec((tm, C), lambda i: (i, 0)),
        compiler_params=pltpu.CompilerParams(dimension_semantics=("parallel",)),
    )(xp, g)
    return out[:N] if Npad != N else out


def _ln_linear_kernel(x_ref, g_ref, wt_ref, b_ref, o_ref, h_ref):
    # RMSNorm is computed once per row block (j == 0) into a bf16 VMEM scratch
    # and reused for every output-column tile -- no redundant cross-lane
    # reduce / scale pass per j.
    @pl.when(pl.program_id(1) == 0)
    def _norm():
        x = x_ref[...].astype(jnp.float32)
        ms = jnp.mean(x * x, axis=-1, keepdims=True)
        h_ref[...] = (x * jax.lax.rsqrt(ms + 1e-6) * g_ref[...]).astype(jnp.bfloat16)

    acc = jnp.dot(h_ref[...], wt_ref[...], preferred_element_type=jnp.float32)
    o_ref[...] = (acc + b_ref[...]).astype(o_ref.dtype)


def ln_linear(x, g, wt, b, out_dtype=None):
    # Fused RMSNorm -> matmul + bias.  x: [N, Din], g: [1, Din], wt bf16.
    N, Din = x.shape
    Dout = wt.shape[1]
    out_dtype = jnp.float32 if out_dtype is None else out_dtype
    tm, Npad = _row_tile(N, 256)
    Mpad = _round_up(Dout, 128)
    if Mpad <= 512:
        tn = Mpad            # e.g. 3C in one j tile -> pl.when(j==0) always hit
    elif Mpad % 256 == 0:
        tn = 256
    else:
        tn = 128
    xp = _pad_rows_to(x, Npad)
    wtp = wt if Mpad == Dout else jnp.pad(wt, ((0, 0), (0, Mpad - Dout)))
    bp = b if Mpad == Dout else jnp.pad(b, ((0, 0), (0, Mpad - Dout)))
    out = pl.pallas_call(
        _ln_linear_kernel,
        out_shape=jax.ShapeDtypeStruct((Npad, Mpad), out_dtype),
        grid=(Npad // tm, Mpad // tn),
        in_specs=[pl.BlockSpec((tm, Din), lambda i, j: (i, 0)),
                  pl.BlockSpec((1, Din), lambda i, j: (0, 0)),
                  pl.BlockSpec((Din, tn), lambda i, j: (0, j)),
                  pl.BlockSpec((1, tn), lambda i, j: (0, j))],
        out_specs=pl.BlockSpec((tm, tn), lambda i, j: (i, j)),
        scratch_shapes=[pltpu.VMEM((tm, Din), jnp.bfloat16)],
        compiler_params=pltpu.CompilerParams(
            dimension_semantics=("parallel", "arbitrary")),
    )(xp, g, wtp, bp)
    if Npad != N or Mpad != Dout:
        out = out[:N, :Dout]
    return out


def _ln_mlp_kernel(x_ref, g_ref, w1_ref, b1_ref, w2_ref, b2_ref, o_ref):
    x = x_ref[...].astype(jnp.float32)
    ms = jnp.mean(x * x, axis=-1, keepdims=True)
    h = (x * jax.lax.rsqrt(ms + 1e-6) * g_ref[...]).astype(jnp.bfloat16)
    h1 = jnp.dot(h, w1_ref[...], preferred_element_type=jnp.float32) + b1_ref[...]
    h1 = _gelu_exact(h1)
    o = jnp.dot(h1.astype(jnp.bfloat16), w2_ref[...],
                preferred_element_type=jnp.float32) + b2_ref[...]
    o_ref[...] = o.astype(o_ref.dtype)


def _ln_mlp_call(xp, g, w1, b1, w2, b2, *, tm, single_buffer):
    Npad, C = xp.shape
    H = w1.shape[1]

    def wspec(shape, imap):
        # Grid-invariant operands: single-buffer them to halve their VMEM
        # footprint (matters on v7x: 64 MiB physical; v5e: 16 MiB scoped default).
        if single_buffer:
            return pl.BlockSpec(shape, imap, pipeline_mode=pl.Buffered(1))
        return pl.BlockSpec(shape, imap)

    return pl.pallas_call(
        _ln_mlp_kernel,
        out_shape=jax.ShapeDtypeStruct((Npad, C), jnp.float32),
        grid=(Npad // tm,),
        in_specs=[pl.BlockSpec((tm, C), lambda i: (i, 0)),
                  wspec((1, C), lambda i: (0, 0)),
                  wspec((C, H), lambda i: (0, 0)),
                  wspec((1, H), lambda i: (0, 0)),
                  wspec((H, C), lambda i: (0, 0)),
                  wspec((1, C), lambda i: (0, 0))],
        out_specs=pl.BlockSpec((tm, C), lambda i: (i, 0)),
        compiler_params=pltpu.CompilerParams(
            dimension_semantics=("parallel",),
            vmem_limit_bytes=48 * 1024 * 1024),
    )(xp, g, w1, b1, w2, b2)


def ln_mlp(x, g, w1, b1, w2, b2):
    # Fused RMSNorm -> fc1 -> GELU(exact) -> fc2, row-tiled; weights resident.
    N, C = x.shape
    tm, Npad = _row_tile(N, 256)
    xp = _pad_rows_to(x, Npad)
    if _SINGLE_BUFFER_OK[0]:
        try:
            out = _ln_mlp_call(xp, g, w1, b1, w2, b2, tm=tm, single_buffer=True)
        except Exception:
            _SINGLE_BUFFER_OK[0] = False
            out = _ln_mlp_call(xp, g, w1, b1, w2, b2, tm=tm, single_buffer=False)
    else:
        out = _ln_mlp_call(xp, g, w1, b1, w2, b2, tm=tm, single_buffer=False)
    return out[:N] if Npad != N else out


def _attn_kernel(qkv_ref, o_ref, *, num_heads, C, S, R, n_valid):
    # qkv_ref: [R, 3C] bf16 (R = patches_per_step * S).  Patch attention is
    # expressed as one [R, Dh] x [Dh, R] score matmul per head with an
    # in-kernel block-diagonal (same-patch) + key-validity mask, so the MXU
    # sees large matmuls instead of Pb tiny [S, Dh] x [Dh, S] ones.  The
    # softmax scale is folded into the q-columns of the qkv weights at init.
    Dh = C // num_heads
    blk = pl.program_id(0)

    col = jax.lax.broadcasted_iota(jnp.int32, (1, R), 1)
    key_valid = (blk * R + col) < n_valid                      # [1, R]
    if R == S:
        mask = key_valid                                       # single patch/block
    else:
        row_p = jax.lax.broadcasted_iota(jnp.int32, (R, 1), 0) // S
        col_p = col // S
        mask = jnp.logical_and(row_p == col_p, key_valid)      # [R, R]

    for h in range(num_heads):
        lo = h * Dh
        qh = qkv_ref[:, lo:lo + Dh]                            # bf16, no upcast
        kh = qkv_ref[:, C + lo:C + lo + Dh]
        vh = qkv_ref[:, 2 * C + lo:2 * C + lo + Dh]
        s = jax.lax.dot_general(qh, kh, (((1,), (1,)), ((), ())),
                                preferred_element_type=jnp.float32)  # [R, R]
        s = jnp.where(mask, s, -1e9)
        m = jnp.max(s, axis=-1, keepdims=True)
        e = jnp.exp(s - m)
        r = pl.reciprocal(jnp.sum(e, axis=-1, keepdims=True), approx=True)
        p = (e * r).astype(jnp.bfloat16)
        # Write this head's output straight into the lane-dense [R, C] block
        # (no concat, no simultaneously-live per-head results).
        o_ref[:, lo:lo + Dh] = jnp.dot(
            p, vh, preferred_element_type=jnp.float32).astype(o_ref.dtype)


def patch_mha(qkv, num_heads, patch_size, rows_per_step, n_valid):
    # qkv: [Npad, 3C] bf16, Npad a multiple of rows_per_step (itself a
    # multiple of patch_size).  Rows >= n_valid are padding: they are masked
    # out of the keys; their outputs are garbage but are sliced off before use.
    Npad, threeC = qkv.shape
    C = threeC // 3
    R = rows_per_step
    assert Npad % R == 0 and R % patch_size == 0
    out = pl.pallas_call(
        partial(_attn_kernel, num_heads=num_heads, C=C, S=patch_size, R=R,
                n_valid=n_valid),
        out_shape=jax.ShapeDtypeStruct((Npad, C), jnp.bfloat16),
        grid=(Npad // R,),
        in_specs=[pl.BlockSpec((R, threeC), lambda i: (i, 0))],
        out_specs=pl.BlockSpec((R, C), lambda i: (i, 0)),
        compiler_params=pltpu.CompilerParams(
            dimension_semantics=("parallel",),
            vmem_limit_bytes=48 * 1024 * 1024),
    )(qkv)
    return out


# --------------------------- OctFormer (simplified) -------------------------

def octformer_block(xp, p, num_heads, patch_size, rows_per_step, n_valid):
    # TODO(synk): octree dilation / swin shifts / AbsPosEmb are octree-key based
    # and are not reproduced; attention is plain patch attention over the token
    # sequence.  Dropout (drop_rate) runs in eval mode (identity).
    # xp stays padded (multiple of rows_per_step) across the whole block.
    qkv = ln_linear(xp, p["ln1"], p["qkv_wt"], p["qkv_b"],
                    out_dtype=jnp.bfloat16)                       # [Npad, 3C] bf16
    attn = patch_mha(qkv, num_heads, patch_size, rows_per_step, n_valid)  # bf16
    o = linear(attn, p["proj_wt"], p["proj_b"])                   # fp32
    xp = xp + o
    h = ln_mlp(xp, p["ln2"], p["fc1_wt"], p["fc1_b"], p["fc2_wt"], p["fc2_b"])
    return xp + h


def run_blocks(x, blocks, num_heads, patch_size):
    # TODO(synk): depth2batch / batch2depth octree reordering is identity here.
    # Pad once to a multiple of the attention row block (~512 rows per grid
    # step); every kernel inside runs on the padded shape; slice once at end.
    N = x.shape[0]
    S = patch_size
    R = S * max(1, 512 // S)
    xp = _pad_rows_to(x, _round_up(N, R))
    for blk in blocks:
        xp = octformer_block(xp, blk, num_heads, S, R, n_valid=N)
    return xp[:N] if xp.shape[0] != N else xp


# ------------------------------- Parameters ---------------------------------

def dense_params(key, din, dout, col_scale=None):
    # PyTorch weight layout [dout, din]; stored transposed and in bf16 (MXU
    # operand).  col_scale (if given) is folded into the fp32 weights before
    # the bf16 cast (used to fold the attention softmax scale into q).
    w = 0.02 * jax.random.normal(key, (dout, din), jnp.float32)
    b = jnp.zeros((1, dout), jnp.float32)
    if col_scale is not None:
        w = w * col_scale[:, None]
        b = b * col_scale[None, :]
    return w.T.astype(jnp.bfloat16), b


def init_block_params(key, C, mlp_ratio, num_heads):
    ks = jax.random.split(key, 4)
    # Fold 1/sqrt(Dh) into the q columns of the qkv projection (exact; removes
    # the in-kernel VPU pass over the [R, R] score tensor).
    scale = 1.0 / math.sqrt(C // num_heads)
    qkv_scale = jnp.concatenate([jnp.full((C,), scale, jnp.float32),
                                 jnp.ones((2 * C,), jnp.float32)])
    qkv_wt, qkv_b = dense_params(ks[0], C, 3 * C, col_scale=qkv_scale)
    proj_wt, proj_b = dense_params(ks[1], C, C)
    fc1_wt, fc1_b = dense_params(ks[2], C, mlp_ratio * C)
    fc2_wt, fc2_b = dense_params(ks[3], mlp_ratio * C, C)
    return dict(ln1=jnp.ones((1, C), jnp.float32), ln2=jnp.ones((1, C), jnp.float32),
                qkv_wt=qkv_wt, qkv_b=qkv_b, proj_wt=proj_wt, proj_b=proj_b,
                fc1_wt=fc1_wt, fc1_b=fc1_b, fc2_wt=fc2_wt, fc2_b=fc2_b)


def init_params(key, cfg):
    C = cfg["num_embed"]
    keys = jax.random.split(key, 8 + cfg["num_blocks"])
    params = {
        "split_emb": 0.02 * jax.random.normal(keys[0], (cfg["split_size"], C), jnp.float32),
        "class_emb": 0.02 * jax.random.normal(keys[1], (cfg["num_classes"], C), jnp.float32),
    }
    params["vq_proj_wt"], params["vq_proj_b"] = dense_params(keys[2], cfg["num_vq_embed"], C)
    params["split_head_wt"], params["split_head_b"] = dense_params(keys[3], C, cfg["split_size"])
    params["vq_head_wt"], params["vq_head_b"] = dense_params(
        keys[4], C, cfg["vq_size"] * cfg["vq_groups"])
    params["encoder_ln"] = jnp.ones((1, C), jnp.float32)
    params["decoder_ln"] = jnp.ones((1, C), jnp.float32)
    nb = cfg["num_blocks"] // 2
    params["encoder"] = [init_block_params(keys[5 + i], C, cfg["mlp_ratio"], cfg["num_heads"])
                         for i in range(nb)]
    params["decoder"] = [init_block_params(keys[5 + nb + i], C, cfg["mlp_ratio"], cfg["num_heads"])
                         for i in range(nb)]
    return params


# ------------------------------ Loss helpers ---------------------------------

def cross_entropy(logits, targets):
    logz = jax.scipy.special.logsumexp(logits, axis=-1)
    picked = jnp.take_along_axis(logits, targets[:, None], axis=-1)[:, 0]
    return jnp.mean(logz - picked)


def get_correct_topk(logits, targets, topk=1):
    topk = min(topk, logits.shape[-1] - 1)
    _, idx = jax.lax.top_k(logits, topk)
    return idx == targets[:, None]


# ------------------------------ OctGPT forward -------------------------------

def octgpt_forward(params, cfg, split, zq, targets_vq, mask_np, batch_id):
    B = cfg["batch_size"]
    C = cfg["num_embed"]
    buf = cfg["buffer_size"]
    nnum_split = split.shape[0]
    nnum_vq = zq.shape[0]

    # condition_type == 'none': class embedding of zeros
    condition = jnp.zeros((B,), jnp.int32)
    cond = params["class_emb"][condition]                       # [B, C]

    targets_split = split
    split_tok = params["split_emb"][split]                      # [Ns, C]
    # TODO(synk): vqvae.extract_code / quantizer is external; zq & indices are synthetic inputs.
    vq_tok = linear(zq, params["vq_proj_wt"], params["vq_proj_b"])  # [Nv, C]
    x = jnp.concatenate([split_tok, vq_tok], axis=0)            # [N, C]

    # random_masking (condition_type 'none' -> replace masked rows with cond[batch_id])
    mask = jnp.asarray(mask_np)
    x = jnp.where(mask[:, None], cond[batch_id], x)

    # --- forward_model ---
    buffer = jnp.repeat(cond[:, None, :], buf, axis=1).reshape(-1, C)   # [B*buf, C]
    x = jnp.concatenate([buffer, x], axis=0)
    full_mask_np = np.concatenate([np.zeros(B * buf, dtype=bool), mask_np])
    unmasked_idx = np.nonzero(~full_mask_np)[0]

    x_enc = x[unmasked_idx]
    x_enc = run_blocks(x_enc, params["encoder"], cfg["num_heads"], cfg["patch_size"])
    x_enc = rmsnorm(x_enc, params["encoder_ln"])
    x = x.at[unmasked_idx].set(x_enc)

    x = run_blocks(x, params["decoder"], cfg["num_heads"], cfg["patch_size"])
    x = rmsnorm(x, params["decoder_ln"])
    x = x[B * buf:]

    # --- heads / losses ---
    out = {}
    split_logits = linear(x[:nnum_split], params["split_head_wt"], params["split_head_b"])
    mask_split_idx = np.nonzero(mask_np[:nnum_split])[0]
    sl = split_logits[mask_split_idx]
    st = targets_split[mask_split_idx]
    out["split_loss"] = cross_entropy(sl, st)
    out["split_accuracy"] = get_correct_topk(sl, st, topk=1).sum() / float(
        max(len(mask_split_idx), 1))

    vq_logits = linear(x[-nnum_vq:], params["vq_head_wt"], params["vq_head_b"])
    mask_vq_idx = np.nonzero(mask_np[-nnum_vq:])[0]
    vl = vq_logits[mask_vq_idx].reshape(-1, cfg["vq_size"])   # matches PyTorch .reshape(-1, vq_size)
    vt = targets_vq[mask_vq_idx].reshape(-1)
    out["vq_loss"] = cross_entropy(vl, vt)
    out["top5_accuracy"] = get_correct_topk(vl, vt, topk=5).sum() / float(
        max(len(mask_vq_idx), 1) * cfg["vq_groups"])
    return out


# ----------------------------------- main ------------------------------------

if __name__ == "__main__":
    cfg = dict(
        num_embed=128, num_heads=4, num_blocks=4, num_classes=1,
        patch_size=16, buffer_size=4, split_size=2,
        num_vq_embed=16, vq_size=2, vq_groups=16,
        batch_size=2, mlp_ratio=4,
    )
    nnum_split = 256
    nnum_vq = 256
    seq_len = nnum_split + nnum_vq

    root = jax.random.PRNGKey(0)
    kp, ks, kz, kt, ko = jax.random.split(root, 5)

    params = init_params(kp, cfg)

    split = jax.random.randint(ks, (nnum_split,), 0, cfg["split_size"], dtype=jnp.int32)
    zq = jax.random.normal(kz, (nnum_vq, cfg["num_vq_embed"]), jnp.float32)
    targets_vq = jax.random.randint(kt, (nnum_vq, cfg["vq_groups"]), 0, cfg["vq_size"],
                                    dtype=jnp.int32)

    # TODO(synk): mask ratio is fixed at 0.5 instead of sampled from truncnorm.
    orders = np.array(jax.random.permutation(ko, seq_len))
    num_masked = max(int(np.ceil(seq_len * 0.5)), 1)
    mask_np = np.zeros(seq_len, dtype=bool)
    mask_np[orders[:num_masked]] = True
    # Guard against a degenerate mask that selects zero tokens of one type.
    if not mask_np[:nnum_split].any():
        mask_np[0] = True
    if not mask_np[nnum_split:].any():
        mask_np[nnum_split] = True

    # TODO(synk): get_batch_id(octree, ...) replaced by a synthetic per-token batch id.
    batch_id = jnp.asarray(np.concatenate([
        np.repeat(np.arange(cfg["batch_size"]), nnum_split // cfg["batch_size"]),
        np.repeat(np.arange(cfg["batch_size"]), nnum_vq // cfg["batch_size"]),
    ]).astype(np.int32))

    out = octgpt_forward(params, cfg, split, zq, targets_vq, mask_np, batch_id)
    jax.block_until_ready(out["vq_loss"])
    jax.block_until_ready(out["split_loss"])
    print("KERNEL_OK")
</pallas_src>

<mosaic_0001>
module attributes {stable_mosaic.version = 11 : i64} {
  func.func @_linear_kernel(%arg0: i32, %arg1: i32, %arg2: i32, %arg3: memref<256x16xbf16, #tpu.memory_space<vmem>>, %arg4: memref<16x128xbf16, #tpu.memory_space<vmem>>, %arg5: memref<1x128xf32, #tpu.memory_space<vmem>>, %arg6: memref<256x128xf32, #tpu.memory_space<vmem>>, %arg7: memref<256x128xf32, #tpu.memory_space<vmem>>) attributes {dimension_semantics = [#tpu.dimension_semantics<parallel>, #tpu.dimension_semantics<parallel>, #tpu.dimension_semantics<arbitrary>], iteration_bounds = array<i64: 1, 1, 1>, scalar_prefetch = 0 : i64, scratch_operands = 1 : i64, tpu.core_type = #tpu.core_type<tc>, window_params = [{transform_indices = @transform_0, window_bounds = array<i64: 256, 16>}, {transform_indices = @transform_1, window_bounds = array<i64: 16, 128>}, {transform_indices = @transform_2, window_bounds = array<i64: 1, 128>}, {transform_indices = @transform_3, window_bounds = array<i64: 256, 128>}]} {
    %c0_i32 = arith.constant 0 : i32
    %0 = arith.cmpi eq, %arg2, %c0_i32 : i32
    %1 = arith.extui %0 : i1 to i32
    %c0_i32_0 = arith.constant 0 : i32
    %2 = arith.cmpi ne, %1, %c0_i32_0 : i32
    scf.if %2 {
      %cst_10 = arith.constant 0.000000e+00 : f32
      %12 = vector.broadcast %cst_10 : f32 to vector<256x128xf32>
      %c0_11 = arith.constant 0 : index
      %c0_12 = arith.constant 0 : index
      %13 = vector.load %arg7[%c0_11, %c0_12] : memref<256x128xf32, #tpu.memory_space<vmem>>, vector<256x128xf32>
      tpu.vector_store %arg7[%c0_11, %c0_12], %12 {strides = array<i32>} : memref<256x128xf32, #tpu.memory_space<vmem>>, vector<256x128xf32>,
    } else {
    }
    %c0 = arith.constant 0 : index
    %c0_1 = arith.constant 0 : index
    %3 = vector.load %arg7[%c0, %c0_1] : memref<256x128xf32, #tpu.memory_space<vmem>>, vector<256x128xf32>
    %c0_2 = arith.constant 0 : index
    %c0_3 = arith.constant 0 : index
    %4 = vector.load %arg3[%c0_2, %c0_3] : memref<256x16xbf16, #tpu.memory_space<vmem>>, vector<256x16xbf16>
    %c0_4 = arith.constant 0 : index
    %c0_5 = arith.constant 0 : index
    %5 = vector.load %arg4[%c0_4, %c0_5] : memref<16x128xbf16, #tpu.memory_space<vmem>>, vector<16x128xbf16>
    %cst = arith.constant dense<0.000000e+00> : vector<256x128xf32>
    %6 = tpu.matmul %4, %5, %cst {dimension_numbers = #tpu.dot_dimension_numbers<[1], [0], [0], [1], [0, 0, 1, 1], [], []>} : vector<256x16xbf16>, vector<16x128xbf16>, vector<256x128xf32> -> vector<256x128xf32>
    %7 = arith.addf %3, %6 : vector<256x128xf32>
    %c0_6 = arith.constant 0 : index
    %c0_7 = arith.constant 0 : index
    %8 = vector.load %arg7[%c0_6, %c0_7] : memref<256x128xf32, #tpu.memory_space<vmem>>, vector<256x128xf32>
    tpu.vector_store %arg7[%c0_6, %c0_7], %7 {strides = array<i32>} : memref<256x128xf32, #tpu.memory_space<vmem>>, vector<256x128xf32>,
    %c0_i32_8 = arith.constant 0 : i32
    %9 = arith.cmpi eq, %arg2, %c0_i32_8 : i32
    %10 = arith.extui %9 : i1 to i32
    %c0_i32_9 = arith.constant 0 : i32
    %11 = arith.cmpi ne, %10, %c0_i32_9 : i32
    scf.if %11 {
      %c0_10 = arith.constant 0 : index
      %c0_11 = arith.constant 0 : index
      %12 = vector.load %arg7[%c0_10, %c0_11] : memref<256x128xf32, #tpu.memory_space<vmem>>, vector<256x128xf32>
      %c0_12 = arith.constant 0 : index
      %c0_13 = arith.constant 0 : index
      %13 = vector.load %arg5[%c0_12, %c0_13] : memref<1x128xf32, #tpu.memory_space<vmem>>, vector<1x128xf32>
      %14 = vector.broadcast %13 : vector<1x128xf32> to vector<256x128xf32>
      %15 = arith.addf %12, %14 : vector<256x128xf32>
      %c0_14 = arith.constant 0 : index
      %c0_15 = arith.constant 0 : index
      %16 = vector.load %arg6[%c0_14, %c0_15] : memref<256x128xf32, #tpu.memory_space<vmem>>, vector<256x128xf32>
      tpu.vector_store %arg6[%c0_14, %c0_15], %15 {strides = array<i32>} : memref<256x128xf32, #tpu.memory_space<vmem>>, vector<256x128xf32>,
    } else {
    }
    return
  }
  func.func @transform_0(%arg0: i32, %arg1: i32, %arg2: i32) -> (i32, i32) {
    %c0_i32 = arith.constant 0 : i32
    return %arg0, %arg2 : i32, i32
  }
  func.func @transform_1(%arg0: i32, %arg1: i32, %arg2: i32) -> (i32, i32) {
    %c0_i32 = arith.constant 0 : i32
    return %arg2, %arg1 : i32, i32
  }
  func.func @transform_2(%arg0: i32, %arg1: i32, %arg2: i32) -> (i32, i32) {
    %c0_i32 = arith.constant 0 : i32
    %c0_i32_0 = arith.constant 0 : i32
    return %c0_i32, %arg1 : i32, i32
  }
  func.func @transform_3(%arg0: i32, %arg1: i32, %arg2: i32) -> (i32, i32) {
    %c0_i32 = arith.constant 0 : i32
    return %arg0, %arg1 : i32, i32
  }
}

</mosaic_0001>

<llo_original>
// kernel: tpu_custom_call.1
$region0: #{tpu_custom_call.1}
  #allocation0 [shape = 'u32[]', space=smem, size = 0x4, offset = 0x4, fixed_abs, tag = 'smem constant byte address 0x4 - core index']
  #allocation1 [shape = 'u32[144,128]{1,0:T(1,128)}', space=vmem, size = 0x12000, scoped, tag = 'internal scratch']
  #allocation2 [shape = 'f32[256,128]{1,0:T(8,128)}', space=vmem, size = 0x20000, scoped, tag = 'scratch operand']
  %s0 = inlined_call_operand.vmem [shape: bf16[256,16], index: 0, kind: input, shape index: {}]
  %s1 = inlined_call_operand.vmem [shape: bf16[16,128], index: 1, kind: input, shape index: {}]
  %s2 = inlined_call_operand.vmem [shape: f32[1,128], index: 2, kind: input, shape index: {}]
  %s3 = inlined_call_operand.hbm [shape: f32[256,128], index: 3, kind: output, shape index: {}]
  %s4 = sld [smem:[#allocation0]]
  $region30: #{tpu_custom_call.1} parent=0
    _
  %s6 = ssub.s32 1, %s4
  %s7 = scalar_select 0, %s6, %s4
  $region1: #{tpu_custom_call.1} parent=0
    #allocation3 [shape = 'u8[131072]{0}', space=vmem, size = 0x20000, scoped, tag = 'output window, operand 0, single buffered']
    #allocation4 [shape = 's32[1]{0}', space=sflag, size = 0x4, scoped, tag = 'scoped memory for tpu_custom_call.1']
    %8 = vsyncpa [#allocation4], 0
    // Predicated region
    $region2: #{tpu_custom_call.1} parent=1 // pred_check
      _
    $region3: #{tpu_custom_call.1} parent=1 // pred_check_branch
      %10 = sbr.rel (0) target = $region5
    $region4: #{tpu_custom_call.1} parent=1 // pred_region
      _
    $region5: #{tpu_custom_call.1} parent=1 // pred_fallthru
      _
    // Predicated region
    $region6: #{tpu_custom_call.1} parent=1 // pred_check
      _
    $region7: #{tpu_custom_call.1} parent=1 // pred_check_branch
      %12 = sbr.rel (0) target = $region9
    $region8: #{tpu_custom_call.1} parent=1 // pred_region
      _
    $region9: #{tpu_custom_call.1} parent=1 // pred_fallthru
      _
    // Predicated region
    $region10: #{tpu_custom_call.1} parent=1 // pred_check
      _
    $region11: #{tpu_custom_call.1} parent=1 // pred_check_branch
      %14 = sbr.rel (0) target = $region13
    $region12: #{tpu_custom_call.1} parent=1 // pred_region
      _
    $region13: #{tpu_custom_call.1} parent=1 // pred_fallthru
      _
    %p16 = scmp.eq.s32.totalorder 0, 0
    // Predicated region
    $region14: #{tpu_custom_call.1} parent=1 // pred_check
      %p17 = pneg %p16
    $region15: #{tpu_custom_call.1} parent=1 // pred_check_branch
      %19 = sbr.rel (%p17) target = $region17
    $region16: #{tpu_custom_call.1} parent=1 // pred_region
      %20 = vst [vmem:[#allocation2] sm:$0xff] 0.0
      %21 = vst [vmem:[#allocation2 + $0x8] sm:$0xff] 0.0
      %22 = vst [vmem:[#allocation2 + $0x10] sm:$0xff] 0.0
      %23 = vst [vmem:[#allocation2 + $0x18] sm:$0xff] 0.0
      %24 = vst [vmem:[#allocation2 + $0x20] sm:$0xff] 0.0
      %25 = vst [vmem:[#allocation2 + $0x28] sm:$0xff] 0.0
      %26 = vst [vmem:[#allocation2 + $0x30] sm:$0xff] 0.0
      %27 = vst [vmem:[#allocation2 + $0x38] sm:$0xff] 0.0
      %28 = vst [vmem:[#allocation2 + $0x40] sm:$0xff] 0.0
      %29 = vst [vmem:[#allocation2 + $0x48] sm:$0xff] 0.0
      %30 = vst [vmem:[#allocation2 + $0x50] sm:$0xff] 0.0
      %31 = vst [vmem:[#allocation2 + $0x58] sm:$0xff] 0.0
      %32 = vst [vmem:[#allocation2 + $0x60] sm:$0xff] 0.0
      %33 = vst [vmem:[#allocation2 + $0x68] sm:$0xff] 0.0
      %34 = vst [vmem:[#allocation2 + $0x70] sm:$0xff] 0.0
      %35 = vst [vmem:[#allocation2 + $0x78] sm:$0xff] 0.0
      %36 = vst [vmem:[#allocation2 + $0x80] sm:$0xff] 0.0
      %37 = vst [vmem:[#allocation2 + $0x88] sm:$0xff] 0.0
      %38 = vst [vmem:[#allocation2 + $0x90] sm:$0xff] 0.0
      %39 = vst [vmem:[#allocation2 + $0x98] sm:$0xff] 0.0
      %40 = vst [vmem:[#allocation2 + $0xa0] sm:$0xff] 0.0
      %41 = vst [vmem:[#allocation2 + $0xa8] sm:$0xff] 0.0
      %42 = vst [vmem:[#allocation2 + $0xb0] sm:$0xff] 0.0
      %43 = vst [vmem:[#allocation2 + $0xb8] sm:$0xff] 0.0
      %44 = vst [vmem:[#allocation2 + $0xc0] sm:$0xff] 0.0
      %45 = vst [vmem:[#allocation2 + $0xc8] sm:$0xff] 0.0
      %46 = vst [vmem:[#allocation2 + $0xd0] sm:$0xff] 0.0
      %47 = vst [vmem:[#allocation2 + $0xd8] sm:$0xff] 0.0
      %48 = vst [vmem:[#allocation2 + $0xe0] sm:$0xff] 0.0
      %49 = vst [vmem:[#allocation2 + $0xe8] sm:$0xff] 0.0
      %50 = vst [vmem:[#allocation2 + $0xf0] sm:$0xff] 0.0
      %51 = vst [vmem:[#allocation2 + $0xf8] sm:$0xff] 0.0
    $region17: #{tpu_custom_call.1} parent=1 // pred_fallthru
      _
    %v52 = vld [vmem:[#allocation2] sm:$0xff]
    %v53 = vld [vmem:[#allocation2 + $0x8] sm:$0xff]
    %v54 = vld [vmem:[#allocation2 + $0x10] sm:$0xff]
    %v55 = vld [vmem:[#allocation2 + $0x18] sm:$0xff]
    %v56 = vld [vmem:[#allocation2 + $0x20] sm:$0xff]
    %v57 = vld [vmem:[#allocation2 + $0x28] sm:$0xff]
    %v58 = vld [vmem:[#allocation2 + $0x30] sm:$0xff]
    %v59 = vld [vmem:[#allocation2 + $0x38] sm:$0xff]
    %v60 = vld [vmem:[#allocation2 + $0x40] sm:$0xff]
    %v61 = vld [vmem:[#allocation2 + $0x48] sm:$0xff]
    %v62 = vld [vmem:[#allocation2 + $0x50] sm:$0xff]
    %v63 = vld [vmem:[#allocation2 + $0x58] sm:$0xff]
    %v64 = vld [vmem:[#allocation2 + $0x60] sm:$0xff]
    %v65 = vld [vmem:[#allocation2 + $0x68] sm:$0xff]
    %v66 = vld [vmem:[#allocation2 + $0x70] sm:$0xff]
    %v67 = vld [vmem:[#allocation2 + $0x78] sm:$0xff]
    %v68 = vld [vmem:[#allocation2 + $0x80] sm:$0xff]
    %v69 = vld [vmem:[#allocation2 + $0x88] sm:$0xff]
    %v70 = vld [vmem:[#allocation2 + $0x90] sm:$0xff]
    %v71 = vld [vmem:[#allocation2 + $0x98] sm:$0xff]
    %v72 = vld [vmem:[#allocation2 + $0xa0] sm:$0xff]
    %v73 = vld [vmem:[#allocation2 + $0xa8] sm:$0xff]
    %v74 = vld [vmem:[#allocation2 + $0xb0] sm:$0xff]
    %v75 = vld [vmem:[#allocation2 + $0xb8] sm:$0xff]
    %v76 = vld [vmem:[#allocation2 + $0xc0] sm:$0xff]
    %v77 = vld [vmem:[#allocation2 + $0xc8] sm:$0xff]
    %v78 = vld [vmem:[#allocation2 + $0xd0] sm:$0xff]
    %v79 = vld [vmem:[#allocation2 + $0xd8] sm:$0xff]
    %v80 = vld [vmem:[#allocation2 + $0xe0] sm:$0xff]
    %v81 = vld [vmem:[#allocation2 + $0xe8] sm:$0xff]
    %v82 = vld [vmem:[#allocation2 + $0xf0] sm:$0xff]
    %v83 = vld [vmem:[#allocation2 + $0xf8] sm:$0xff]
    %v84 = vld [vmem:[%s0] sm:$0xf]
    %v85 = vld [vmem:[%s0 + $0x4] sm:$0xf]
    %v86 = vld [vmem:[%s0 + $0x8] sm:$0xf]
    %v87 = vld [vmem:[%s0 + $0xc] sm:$0xf]
    %v88 = vld [vmem:[%s0 + $0x10] sm:$0xf]
    %v89 = vld [vmem:[%s0 + $0x14] sm:$0xf]
    %v90 = vld [vmem:[%s0 + $0x18] sm:$0xf]
    %v91 = vld [vmem:[%s0 + $0x1c] sm:$0xf]
    %v92 = vld [vmem:[%s0 + $0x20] sm:$0xf]
    %v93 = vld [vmem:[%s0 + $0x24] sm:$0xf]
    %v94 = vld [vmem:[%s0 + $0x28] sm:$0xf]
    %v95 = vld [vmem:[%s0 + $0x2c] sm:$0xf]
    %v96 = vld [vmem:[%s0 + $0x30] sm:$0xf]
    %v97 = vld [vmem:[%s0 + $0x34] sm:$0xf]
    %v98 = vld [vmem:[%s0 + $0x38] sm:$0xf]
    %v99 = vld [vmem:[%s0 + $0x3c] sm:$0xf]
    %v100 = vld [vmem:[%s0 + $0x40] sm:$0xf]
    %v101 = vld [vmem:[%s0 + $0x44] sm:$0xf]
    %v102 = vld [vmem:[%s0 + $0x48] sm:$0xf]
    %v103 = vld [vmem:[%s0 + $0x4c] sm:$0xf]
    %v104 = vld [vmem:[%s0 + $0x50] sm:$0xf]
    %v105 = vld [vmem:[%s0 + $0x54] sm:$0xf]
    %v106 = vld [vmem:[%s0 + $0x58] sm:$0xf]
    %v107 = vld [vmem:[%s0 + $0x5c] sm:$0xf]
    %v108 = vld [vmem:[%s0 + $0x60] sm:$0xf]
    %v109 = vld [vmem:[%s0 + $0x64] sm:$0xf]
    %v110 = vld [vmem:[%s0 + $0x68] sm:$0xf]
    %v111 = vld [vmem:[%s0 + $0x6c] sm:$0xf]
    %v112 = vld [vmem:[%s0 + $0x70] sm:$0xf]
    %v113 = vld [vmem:[%s0 + $0x74] sm:$0xf]
    %v114 = vld [vmem:[%s0 + $0x78] sm:$0xf]
    %v115 = vld [vmem:[%s0 + $0x7c] sm:$0xf]
    %v116 = vld [vmem:[%s1] sm:$0xf]
    %v117 = vld [vmem:[%s1 + $0x4] sm:$0xf]
    %v150 = vunpack.c.l.b16 %v84
    %v151 = vunpack.c.l.b16 %v85
    %v152 = vunpack.c.l.b16 %v86
    %v153 = vunpack.c.l.b16 %v87
    %v154 = vunpack.c.l.b16 %v88
    %v155 = vunpack.c.l.b16 %v89
    %v156 = vunpack.c.l.b16 %v90
    %v157 = vunpack.c.l.b16 %v91
    %v158 = vunpack.c.l.b16 %v92
    %v159 = vunpack.c.l.b16 %v93
    %v160 = vunpack.c.l.b16 %v94
    %v161 = vunpack.c.l.b16 %v95
    %v162 = vunpack.c.l.b16 %v96
    %v163 = vunpack.c.l.b16 %v97
    %v164 = vunpack.c.l.b16 %v98
    %v165 = vunpack.c.l.b16 %v99
    %v166 = vunpack.c.l.b16 %v100
    %v167 = vunpack.c.l.b16 %v101
    %v168 = vunpack.c.l.b16 %v102
    %v169 = vunpack.c.l.b16 %v103
    %v170 = vunpack.c.l.b16 %v104
    %v171 = vunpack.c.l.b16 %v105
    %v172 = vunpack.c.l.b16 %v106
    %v173 = vunpack.c.l.b16 %v107
    %v174 = vunpack.c.l.b16 %v108
    %v175 = vunpack.c.l.b16 %v109
    %v176 = vunpack.c.l.b16 %v110
    %v177 = vunpack.c.l.b16 %v111
    %v178 = vunpack.c.l.b16 %v112
    %v179 = vunpack.c.l.b16 %v113
    %v180 = vunpack.c.l.b16 %v114
    %v181 = vunpack.c.l.b16 %v115
    %v182 = vpack.c.b16 %v151, %v150
    %v183 = vpack.c.b16 %v153, %v152
    %v184 = vpack.c.b16 %v155, %v154
    %v185 = vpack.c.b16 %v157, %v156
    %v186 = vpack.c.b16 %v159, %v158
    %v187 = vpack.c.b16 %v161, %v160
    %v188 = vpack.c.b16 %v163, %v162
    %v189 = vpack.c.b16 %v165, %v164
    %v190 = vpack.c.b16 %v167, %v166
    %v191 = vpack.c.b16 %v169, %v168
    %v192 = vpack.c.b16 %v171, %v170
    %v193 = vpack.c.b16 %v173, %v172
    %v194 = vpack.c.b16 %v175, %v174
    %v195 = vpack.c.b16 %v177, %v176
    %v196 = vpack.c.b16 %v179, %v178
    %v197 = vpack.c.b16 %v181, %v180
    %v200 = vunpack.c.l.b16 %v116
    %v201 = vunpack.c.l.b16 %v117
    %v202 = vpack.c.b16 %v201, %v200
    %vm204 = vcmask 130048
    %v206 = vsel %vm204, %v182, 0
    %v209 = vsel %vm204, %v183, 0
    %v212 = vsel %vm204, %v184, 0
    %v215 = vsel %vm204, %v185, 0
    %v218 = vsel %vm204, %v186, 0
    %v221 = vsel %vm204, %v187, 0
    %v224 = vsel %vm204, %v188, 0
    %v227 = vsel %vm204, %v189, 0
    %v230 = vsel %vm204, %v190, 0
    %v233 = vsel %vm204, %v191, 0
    %v236 = vsel %vm204, %v192, 0
    %v239 = vsel %vm204, %v193, 0
    %v242 = vsel %vm204, %v194, 0
    %v245 = vsel %vm204, %v195, 0
    %v248 = vsel %vm204, %v196, 0
    %v251 = vsel %vm204, %v197, 0
    %253 = vmatprep.subr.bf16.mxu0 0
    %254 = vmatpush1.bf16.msra.mxu0 0
    %255 = vmatprep.subr.bf16.mxu0 0
    %256 = vmatpush1.bf16.msra.mxu0 0
    %257 = vmatprep.subr.bf16.mxu0 0
    %258 = vmatpush1.bf16.msra.mxu0 0
    %259 = vmatprep.subr.bf16.mxu0 0
    %260 = vmatpush1.bf16.msra.mxu0 0
    %261 = vmatprep.subr.bf16.mxu0 0
    %262 = vmatpush1.bf16.msra.mxu0 0
    %263 = vmatprep.subr.bf16.mxu0 0
    %264 = vmatpush1.bf16.msra.mxu0 0
    %265 = vmatprep.subr.bf16.mxu0 0
    %266 = vmatpush1.bf16.msra.mxu0 0
    %267 = vmatprep.subr.bf16.mxu0 0
    %268 = vmatpush1.bf16.msra.mxu0 %v202
    %269 = vmatprep.subr.bf16.mxu0 0
    %270 = vmatpush2.bf16.msra.mxu0 0
    %271 = vmatprep.subr.bf16.mxu0 0
    %272 = vmatpush2.bf16.msra.mxu0 0
    %273 = vmatprep.subr.bf16.mxu0 0
    %274 = vmatpush2.bf16.msra.mxu0 0
    %275 = vmatprep.subr.bf16.mxu0 0
    %276 = vmatpush2.bf16.msra.mxu0 0
    %277 = vmatprep.subr.bf16.mxu0 0
    %278 = vmatpush2.bf16.msra.mxu0 0
    %279 = vmatprep.subr.bf16.mxu0 0
    %280 = vmatpush2.bf16.msra.mxu0 0
    %281 = vmatprep.subr.bf16.mxu0 0
    %282 = vmatpush2.bf16.msra.mxu0 0
    %283 = vmatprep.subr.bf16.mxu0 0
    %284 = vmatpush2.bf16.msra.mxu0 0
    %285 = vmatprep.mubr.bf16.mxu0 0
    %286 = vmatmul.mubr.bf16.gmra.mxu0 %v206
    %v287 = vpop.f32.mrf.mxu0
    %v288 = vadd.f32 0.0, %v287
    %v289 = vpop.f32.mrf.mxu0
    %v290 = vpop.f32.mrf.mxu0
    %v291 = vadd.f32 0.0, %v290
    %v292 = vpop.f32.mrf.mxu0
    %293 = vmatprep.mubr.bf16.mxu0 0
    %294 = vmatmul.mubr.bf16.gmra.mxu0 %v209
    %v295 = vpop.f32.mrf.mxu0
    %v296 = vadd.f32 0.0, %v295
    %v297 = vpop.f32.mrf.mxu0
    %v298 = vpop.f32.mrf.mxu0
    %v299 = vadd.f32 0.0, %v298
    %v300 = vpop.f32.mrf.mxu0
    %301 = vmatprep.mubr.bf16.mxu0 0
    %302 = vmatmul.mubr.bf16.gmra.mxu0 %v212
    %v303 = vpop.f32.mrf.mxu0
    %v304 = vadd.f32 0.0, %v303
    %v305 = vpop.f32.mrf.mxu0
    %v306 = vpop.f32.mrf.mxu0
    %v307 = vadd.f32 0.0, %v306
    %v308 = vpop.f32.mrf.mxu0
    %309 = vmatprep.mubr.bf16.mxu0 0
    %310 = vmatmul.mubr.bf16.gmra.mxu0 %v215
    %v311 = vpop.f32.mrf.mxu0
    %v312 = vadd.f32 0.0, %v311
    %v313 = vpop.f32.mrf.mxu0
    %v314 = vpop.f32.mrf.mxu0
    %v315 = vadd.f32 0.0, %v314
    %v316 = vpop.f32.mrf.mxu0
    %317 = vmatprep.mubr.bf16.mxu0 0
    %318 = vmatmul.mubr.bf16.gmra.mxu0 %v218
    %v319 = vpop.f32.mrf.mxu0
    %v320 = vadd.f32 0.0, %v319
    %v321 = vpop.f32.mrf.mxu0
    %v322 = vpop.f32.mrf.mxu0
    %v323 = vadd.f32 0.0, %v322
    %v324 = vpop.f32.mrf.mxu0
    %325 = vmatprep.mubr.bf16.mxu0 0
    %326 = vmatmul.mubr.bf16.gmra.mxu0 %v221
    %v327 = vpop.f32.mrf.mxu0
    %v328 = vadd.f32 0.0, %v327
    %v329 = vpop.f32.mrf.mxu0
    %v330 = vpop.f32.mrf.mxu0
    %v331 = vadd.f32 0.0, %v330
    %v332 = vpop.f32.mrf.mxu0
    %333 = vmatprep.mubr.bf16.mxu0 0
    %334 = vmatmul.mubr.bf16.gmra.mxu0 %v224
    %v335 = vpop.f32.mrf.mxu0
    %v336 = vadd.f32 0.0, %v335
    %v337 = vpop.f32.mrf.mxu0
    %v338 = vpop.f32.mrf.mxu0
    %v339 = vadd.f32 0.0, %v338
    %v340 = vpop.f32.mrf.mxu0
    %341 = vmatprep.mubr.bf16.mxu0 0
    %342 = vmatmul.mubr.bf16.gmra.mxu0 %v227
    %v343 = vpop.f32.mrf.mxu0
    %v344 = vadd.f32 0.0, %v343
    %v345 = vpop.f32.mrf.mxu0
    %v346 = vpop.f32.mrf.mxu0
    %v347 = vadd.f32 0.0, %v346
    %v348 = vpop.f32.mrf.mxu0
    %349 = vmatprep.mubr.bf16.mxu0 0
    %350 = vmatmul.mubr.bf16.gmra.mxu0 %v230
    %v351 = vpop.f32.mrf.mxu0
    %v352 = vadd.f32 0.0, %v351
    %v353 = vpop.f32.mrf.mxu0
    %v354 = vpop.f32.mrf.mxu0
    %v355 = vadd.f32 0.0, %v354
    %v356 = vpop.f32.mrf.mxu0
    %357 = vmatprep.mubr.bf16.mxu0 0
    %358 = vmatmul.mubr.bf16.gmra.mxu0 %v233
    %v359 = vpop.f32.mrf.mxu0
    %v360 = vadd.f32 0.0, %v359
    %v361 = vpop.f32.mrf.mxu0
    %v362 = vpop.f32.mrf.mxu0
    %v363 = vadd.f32 0.0, %v362
    %v364 = vpop.f32.mrf.mxu0
    %365 = vmatprep.mubr.bf16.mxu0 0
    %366 = vmatmul.mubr.bf16.gmra.mxu0 %v236
    %v367 = vpop.f32.mrf.mxu0
    %v368 = vadd.f32 0.0, %v367
    %v369 = vpop.f32.mrf.mxu0
    %v370 = vpop.f32.mrf.mxu0
    %v371 = vadd.f32 0.0, %v370
    %v372 = vpop.f32.mrf.mxu0
    %373 = vmatprep.mubr.bf16.mxu0 0
    %374 = vmatmul.mubr.bf16.gmra.mxu0 %v239
    %v375 = vpop.f32.mrf.mxu0
    %v376 = vadd.f32 0.0, %v375
    %v377 = vpop.f32.mrf.mxu0
    %v378 = vpop.f32.mrf.mxu0
    %v379 = vadd.f32 0.0, %v378
    %v380 = vpop.f32.mrf.mxu0
    %381 = vmatprep.mubr.bf16.mxu0 0
    %382 = vmatmul.mubr.bf16.gmra.mxu0 %v242
    %v383 = vpop.f32.mrf.mxu0
    %v384 = vadd.f32 0.0, %v383
    %v385 = vpop.f32.mrf.mxu0
    %v386 = vpop.f32.mrf.mxu0
    %v387 = vadd.f32 0.0, %v386
    %v388 = vpop.f32.mrf.mxu0
    %389 = vmatprep.mubr.bf16.mxu0 0
    %390 = vmatmul.mubr.bf16.gmra.mxu0 %v245
    %v391 = vpop.f32.mrf.mxu0
    %v392 = vadd.f32 0.0, %v391
    %v393 = vpop.f32.mrf.mxu0
    %v394 = vpop.f32.mrf.mxu0
    %v395 = vadd.f32 0.0, %v394
    %v396 = vpop.f32.mrf.mxu0
    %397 = vmatprep.mubr.bf16.mxu0 0
    %398 = vmatmul.mubr.bf16.gmra.mxu0 %v248
    %v399 = vpop.f32.mrf.mxu0
    %v400 = vadd.f32 0.0, %v399
    %v401 = vpop.f32.mrf.mxu0
    %v402 = vpop.f32.mrf.mxu0
    %v403 = vadd.f32 0.0, %v402
    %v404 = vpop.f32.mrf.mxu0
    %405 = vmatprep.mubr.bf16.mxu0 0
    %406 = vmatmul.mubr.bf16.gmra.mxu0 %v251
    %v407 = vpop.f32.mrf.mxu0
    %v408 = vadd.f32 0.0, %v407
    %v409 = vpop.f32.mrf.mxu0
    %v410 = vpop.f32.mrf.mxu0
    %v411 = vadd.f32 0.0, %v410
    %v412 = vpop.f32.mrf.mxu0
    %413 = vdwg.mxu0
    %v414 = vadd.f32 %v52, %v288
    %v415 = vadd.f32 %v53, %v291
    %v416 = vadd.f32 %v54, %v296
    %v417 = vadd.f32 %v55, %v299
    %v418 = vadd.f32 %v56, %v304
    %v419 = vadd.f32 %v57, %v307
    %v420 = vadd.f32 %v58, %v312
    %v421 = vadd.f32 %v59, %v315
    %v422 = vadd.f32 %v60, %v320
    %v423 = vadd.f32 %v61, %v323
    %v424 = vadd.f32 %v62, %v328
    %v425 = vadd.f32 %v63, %v331
    %v426 = vadd.f32 %v64, %v336
    %v427 = vadd.f32 %v65, %v339
    %v428 = vadd.f32 %v66, %v344
    %v429 = vadd.f32 %v67, %v347
    %v430 = vadd.f32 %v68, %v352
    %v431 = vadd.f32 %v69, %v355
    %v432 = vadd.f32 %v70, %v360
    %v433 = vadd.f32 %v71, %v363
    %v434 = vadd.f32 %v72, %v368
    %v435 = vadd.f32 %v73, %v371
    %v436 = vadd.f32 %v74, %v376
    %v437 = vadd.f32 %v75, %v379
    %v438 = vadd.f32 %v76, %v384
    %v439 = vadd.f32 %v77, %v387
    %v440 = vadd.f32 %v78, %v392
    %v441 = vadd.f32 %v79, %v395
    %v442 = vadd.f32 %v80, %v400
    %v443 = vadd.f32 %v81, %v403
    %v444 = vadd.f32 %v82, %v408
    %v445 = vadd.f32 %v83, %v411
    %446 = vst [vmem:[#allocation2] sm:$0xff] %v414
    %447 = vst [vmem:[#allocation2 + $0x8] sm:$0xff] %v415
    %448 = vst [vmem:[#allocation2 + $0x10] sm:$0xff] %v416
    %449 = vst [vmem:[#allocation2 + $0x18] sm:$0xff] %v417
    %450 = vst [vmem:[#allocation2 + $0x20] sm:$0xff] %v418
    %451 = vst [vmem:[#allocation2 + $0x28] sm:$0xff] %v419
    %452 = vst [vmem:[#allocation2 + $0x30] sm:$0xff] %v420
    %453 = vst [vmem:[#allocation2 + $0x38] sm:$0xff] %v421
    %454 = vst [vmem:[#allocation2 + $0x40] sm:$0xff] %v422
    %455 = vst [vmem:[#allocation2 + $0x48] sm:$0xff] %v423
    %456 = vst [vmem:[#allocation2 + $0x50] sm:$0xff] %v424
    %457 = vst [vmem:[#allocation2 + $0x58] sm:$0xff] %v425
    %458 = vst [vmem:[#allocation2 + $0x60] sm:$0xff] %v426
    %459 = vst [vmem:[#allocation2 + $0x68] sm:$0xff] %v427
    %460 = vst [vmem:[#allocation2 + $0x70] sm:$0xff] %v428
    %461 = vst [vmem:[#allocation2 + $0x78] sm:$0xff] %v429
    %462 = vst [vmem:[#allocation2 + $0x80] sm:$0xff] %v430
    %463 = vst [vmem:[#allocation2 + $0x88] sm:$0xff] %v431
    %464 = vst [vmem:[#allocation2 + $0x90] sm:$0xff] %v432
    %465 = vst [vmem:[#allocation2 + $0x98] sm:$0xff] %v433
    %466 = vst [vmem:[#allocation2 + $0xa0] sm:$0xff] %v434
    %467 = vst [vmem:[#allocation2 + $0xa8] sm:$0xff] %v435
    %468 = vst [vmem:[#allocation2 + $0xb0] sm:$0xff] %v436
    %469 = vst [vmem:[#allocation2 + $0xb8] sm:$0xff] %v437
    %470 = vst [vmem:[#allocation2 + $0xc0] sm:$0xff] %v438
    %471 = vst [vmem:[#allocation2 + $0xc8] sm:$0xff] %v439
    %472 = vst [vmem:[#allocation2 + $0xd0] sm:$0xff] %v440
    %473 = vst [vmem:[#allocation2 + $0xd8] sm:$0xff] %v441
    %474 = vst [vmem:[#allocation2 + $0xe0] sm:$0xff] %v442
    %475 = vst [vmem:[#allocation2 + $0xe8] sm:$0xff] %v443
    %476 = vst [vmem:[#allocation2 + $0xf0] sm:$0xff] %v444
    %477 = vst [vmem:[#allocation2 + $0xf8] sm:$0xff] %v445
    // Predicated region
    $region18: #{tpu_custom_call.1} parent=1 // pred_check
      %p478 = pneg %p16
    $region19: #{tpu_custom_call.1} parent=1 // pred_check_branch
      %480 = sbr.rel (%p478) target = $region21
    $region20: #{tpu_custom_call.1} parent=1 // pred_region
      %v481 = vld [vmem:[#allocation2] sm:$0xff]
      %v482 = vld [vmem:[#allocation2 + $0x8] sm:$0xff]
      %v483 = vld [vmem:[#allocation2 + $0x10] sm:$0xff]
      %v484 = vld [vmem:[#allocation2 + $0x18] sm:$0xff]
      %v485 = vld [vmem:[#allocation2 + $0x20] sm:$0xff]
      %v486 = vld [vmem:[#allocation2 + $0x28] sm:$0xff]
      %v487 = vld [vmem:[#allocation2 + $0x30] sm:$0xff]
      %v488 = vld [vmem:[#allocation2 + $0x38] sm:$0xff]
      %v489 = vld [vmem:[#allocation2 + $0x40] sm:$0xff]
      %v490 = vld [vmem:[#allocation2 + $0x48] sm:$0xff]
      %v491 = vld [vmem:[#allocation2 + $0x50] sm:$0xff]
      %v492 = vld [vmem:[#allocation2 + $0x58] sm:$0xff]
      %v493 = vld [vmem:[#allocation2 + $0x60] sm:$0xff]
      %v494 = vld [vmem:[#allocation2 + $0x68] sm:$0xff]
      %v495 = vld [vmem:[#allocation2 + $0x70] sm:$0xff]
      %v496 = vld [vmem:[#allocation2 + $0x78] sm:$0xff]
      %v497 = vld [vmem:[#allocation2 + $0x80] sm:$0xff]
      %v498 = vld [vmem:[#allocation2 + $0x88] sm:$0xff]
      %v499 = vld [vmem:[#allocation2 + $0x90] sm:$0xff]
      %v500 = vld [vmem:[#allocation2 + $0x98] sm:$0xff]
      %v501 = vld [vmem:[#allocation2 + $0xa0] sm:$0xff]
      %v502 = vld [vmem:[#allocation2 + $0xa8] sm:$0xff]
      %v503 = vld [vmem:[#allocation2 + $0xb0] sm:$0xff]
      %v504 = vld [vmem:[#allocation2 + $0xb8] sm:$0xff]
      %v505 = vld [vmem:[#allocation2 + $0xc0] sm:$0xff]
      %v506 = vld [vmem:[#allocation2 + $0xc8] sm:$0xff]
      %v507 = vld [vmem:[#allocation2 + $0xd0] sm:$0xff]
      %v508 = vld [vmem:[#allocation2 + $0xd8] sm:$0xff]
      %v509 = vld [vmem:[#allocation2 + $0xe0] sm:$0xff]
      %v510 = vld [vmem:[#allocation2 + $0xe8] sm:$0xff]
      %v511 = vld [vmem:[#allocation2 + $0xf0] sm:$0xff]
      %v512 = vld [vmem:[#allocation2 + $0xf8] sm:$0xff]
      %v513 = vld [vmem:[%s2] sm:$0x1]
      %v515 = vlaneseq
      %v516 = vshrl.u32 %v515, 7
      %v517 = vsub.s32 0, %v516
      %v518 = vrot.slane %v513, %v517
      %v520 = vadd.f32 %v481, %v518
      %v521 = vadd.f32 %v482, %v518
      %v522 = vadd.f32 %v483, %v518
      %v523 = vadd.f32 %v484, %v518
      %v524 = vadd.f32 %v485, %v518
      %v525 = vadd.f32 %v486, %v518
      %v526 = vadd.f32 %v487, %v518
      %v527 = vadd.f32 %v488, %v518
      %v528 = vadd.f32 %v489, %v518
      %v529 = vadd.f32 %v490, %v518
      %v530 = vadd.f32 %v491, %v518
      %v531 = vadd.f32 %v492, %v518
      %v532 = vadd.f32 %v493, %v518
      %v533 = vadd.f32 %v494, %v518
      %v534 = vadd.f32 %v495, %v518
      %v535 = vadd.f32 %v496, %v518
      %v536 = vadd.f32 %v497, %v518
      %v537 = vadd.f32 %v498, %v518
      %v538 = vadd.f32 %v499, %v518
      %v539 = vadd.f32 %v500, %v518
      %v540 = vadd.f32 %v501, %v518
      %v541 = vadd.f32 %v502, %v518
      %v542 = vadd.f32 %v503, %v518
      %v543 = vadd.f32 %v504, %v518
      %v544 = vadd.f32 %v505, %v518
      %v545 = vadd.f32 %v506, %v518
      %v546 = vadd.f32 %v507, %v518
      %v547 = vadd.f32 %v508, %v518
      %v548 = vadd.f32 %v509, %v518
      %v549 = vadd.f32 %v510, %v518
      %v550 = vadd.f32 %v511, %v518
      %v551 = vadd.f32 %v512, %v518
      %552 = vst [vmem:[#allocation3] sm:$0xff] %v520
      %553 = vst [vmem:[#allocation3 + $0x8] sm:$0xff] %v521
      %554 = vst [vmem:[#allocation3 + $0x10] sm:$0xff] %v522
      %555 = vst [vmem:[#allocation3 + $0x18] sm:$0xff] %v523
      %556 = vst [vmem:[#allocation3 + $0x20] sm:$0xff] %v524
      %557 = vst [vmem:[#allocation3 + $0x28] sm:$0xff] %v525
      %558 = vst [vmem:[#allocation3 + $0x30] sm:$0xff] %v526
      %559 = vst [vmem:[#allocation3 + $0x38] sm:$0xff] %v527
      %560 = vst [vmem:[#allocation3 + $0x40] sm:$0xff] %v528
      %561 = vst [vmem:[#allocation3 + $0x48] sm:$0xff] %v529
      %562 = vst [vmem:[#allocation3 + $0x50] sm:$0xff] %v530
      %563 = vst [vmem:[#allocation3 + $0x58] sm:$0xff] %v531
      %564 = vst [vmem:[#allocation3 + $0x60] sm:$0xff] %v532
      %565 = vst [vmem:[#allocation3 + $0x68] sm:$0xff] %v533
      %566 = vst [vmem:[#allocation3 + $0x70] sm:$0xff] %v534
      %567 = vst [vmem:[#allocation3 + $0x78] sm:$0xff] %v535
      %568 = vst [vmem:[#allocation3 + $0x80] sm:$0xff] %v536
      %569 = vst [vmem:[#allocation3 + $0x88] sm:$0xff] %v537
      %570 = vst [vmem:[#allocation3 + $0x90] sm:$0xff] %v538
      %571 = vst [vmem:[#allocation3 + $0x98] sm:$0xff] %v539
      %572 = vst [vmem:[#allocation3 + $0xa0] sm:$0xff] %v540
      %573 = vst [vmem:[#allocation3 + $0xa8] sm:$0xff] %v541
      %574 = vst [vmem:[#allocation3 + $0xb0] sm:$0xff] %v542
      %575 = vst [vmem:[#allocation3 + $0xb8] sm:$0xff] %v543
      %576 = vst [vmem:[#allocation3 + $0xc0] sm:$0xff] %v544
      %577 = vst [vmem:[#allocation3 + $0xc8] sm:$0xff] %v545
      %578 = vst [vmem:[#allocation3 + $0xd0] sm:$0xff] %v546
      %579 = vst [vmem:[#allocation3 + $0xd8] sm:$0xff] %v547
      %580 = vst [vmem:[#allocation3 + $0xe0] sm:$0xff] %v548
      %581 = vst [vmem:[#allocation3 + $0xe8] sm:$0xff] %v549
      %582 = vst [vmem:[#allocation3 + $0xf0] sm:$0xff] %v550
      %583 = vst [vmem:[#allocation3 + $0xf8] sm:$0xff] %v551
    $region21: #{tpu_custom_call.1} parent=1 // pred_fallthru
      _
    // Predicated region
    $region22: #{tpu_custom_call.1} parent=1 // pred_check
      _
    $region23: #{tpu_custom_call.1} parent=1 // pred_check_branch
      %585 = sbr.rel (0) target = $region25
    $region24: #{tpu_custom_call.1} parent=1 // pred_region
      %s587 = ssub.s32 4096, 4096
      %588 = vsyncadd [#allocation4], %s587
      %s589 = sshll.u32 [#allocation3], 4
      %s590 = int_to_ptr.vmem [resolvable:$true] %s589
      %595 = dma.vmem_to_hbm [thread:$0]  %s590, 4096, %s3, [#allocation4], 128, 128, 8
    $region25: #{tpu_custom_call.1} parent=1 // pred_fallthru
      _
    // Predicated region
    $region26: #{tpu_custom_call.1} parent=1 // pred_check
      _
    $region27: #{tpu_custom_call.1} parent=1 // pred_check_branch
      %597 = sbr.rel (0) target = $region29
    $region28: #{tpu_custom_call.1} parent=1 // pred_region
      %598 = dma.done [#allocation4], 4096
    $region29: #{tpu_custom_call.1} parent=1 // pred_fallthru
      _
    %599 = vsyncpa [#allocation4], 1

</llo_original>
